<compile_context>
chip_gen: v7x
topology: tpu7x:2x2x1
jax: 0.10.0
libtpu: 0.0.40
codegen_flags: <defaults>
</compile_context>

<pallas_src>
import jax
import jax.numpy as jnp
from jax import lax
from jax.experimental import pallas as pl
from jax.experimental.pallas import tpu as pltpu

INPUT_SIZE = 16
HIDDEN_SIZE = 64          # must be 64 (h0/c0 hard-coded in the PyTorch module)
NUM_ACTIONS = 4
BATCH = 2
SEQ = 8
A_PAD = 128               # lane-dense output width; sliced to NUM_ACTIONS outside
B_PAD = 8                 # sublane-aligned padded batch


def _sigmoid(z):
    # Numerically stable sigmoid via tanh, identical to 1/(1+exp(-z)).
    return 0.5 * (jnp.tanh(0.5 * z) + 1.0)


def _tree_sum(vals):
    # Pairwise (log-depth) sum of a list of arrays.
    while len(vals) > 1:
        nxt = [vals[i] + vals[i + 1] for i in range(0, len(vals) - 1, 2)]
        if len(vals) % 2:
            nxt.append(vals[-1])
        vals = nxt
    return vals[0]


def _rnn_attn_kernel(x_ref, wih_ref, whh_ref, b_ref, fcw_ref, fcb_ref, o_ref):
    # x_ref   : (T*B, I)   bf16  time-major input rows (row t*B + b = x[b, t, :])
    # wih_ref : (I, 4H)    bf16  W_ih^T
    # whh_ref : (H, 4H)    bf16  W_hh^T
    # b_ref   : (1, 4H)    f32   b_ih + b_hh
    # fcw_ref : (H, A_PAD) bf16  fc weight^T, zero-padded on the lane dim
    # fcb_ref : (1, A_PAD) f32   fc bias, zero-padded
    # o_ref   : (B, A_PAD) f32   padded output logits
    TB = x_ref.shape[0]
    H = whh_ref.shape[0]
    G = whh_ref.shape[1]                                  # 4H
    B = o_ref.shape[0]                                    # padded batch (mult of 8)
    T = TB // B

    # Hoisted input projection: one MXU call covers every (t, b) row.
    xw = (jnp.dot(x_ref[...], wih_ref[...],
                  preferred_element_type=jnp.float32)
          + b_ref[...])                                   # (T*B, 4H) f32

    whh = whh_ref[...]                                    # (H, 4H) bf16, load once

    # Static lane mask for the g-gate block (PyTorch gate order i, f, g, o).
    lane = lax.broadcasted_iota(jnp.int32, (B, G), 1)
    is_g = (lane >= 2 * H) & (lane < 3 * H)

    h = jnp.zeros((B, H), jnp.float32)
    c = jnp.zeros((B, H), jnp.float32)
    hs = []
    # T is a compile-time constant -> fully unrolled recurrence; only the
    # bf16 h @ W_hh^T push sits on the serial critical path each step.
    for t in range(T):
        gates = xw[t * B:(t + 1) * B, :] + jnp.dot(
            h.astype(jnp.bfloat16), whh,
            preferred_element_type=jnp.float32)           # (B, 4H) f32

        # Fused activations: ONE wide tanh over the whole (B, 4H) slab.
        #   non-g lanes: sigmoid(x) = 0.5*tanh(0.5x) + 0.5 ; g lanes: tanh(x)
        z = jnp.where(is_g, gates, 0.5 * gates)
        tt = jnp.tanh(z)
        acts = jnp.where(is_g, tt, 0.5 * tt + 0.5)

        i_g = acts[:, 0:H]
        f_g = acts[:, H:2 * H]
        g_g = acts[:, 2 * H:3 * H]
        o_g = acts[:, 3 * H:4 * H]
        c = f_g * c + i_g * g_g
        h = o_g * jnp.tanh(c)
        hs.append(h)                                      # keep in registers

    # EfficientAttention for the last query row only (fc uses out[:, -1, :]).
    h_last = h                                            # (B, H)
    scale = 1.0 / (H ** 0.5)

    # All T scores with one wide multiply + one lane reduction.
    h_all = jnp.concatenate(hs, axis=0)                   # (T*B, H)
    q_all = jnp.concatenate([h_last] * T, axis=0)         # (T*B, H)
    s_col = jnp.sum(h_all * q_all, axis=-1, keepdims=True) * scale   # (T*B, 1)

    # Pack scores as a (B, T) lane vector -> one max, one exp, one sum.
    scores = jnp.concatenate(
        [s_col[t * B:(t + 1) * B, :] for t in range(T)], axis=1)     # (B, T)
    m = jnp.max(scores, axis=-1, keepdims=True)           # (B, 1)
    e = jnp.exp(scores - m)                               # (B, T)
    denom = jnp.sum(e, axis=-1, keepdims=True)            # (B, 1)
    inv = pl.reciprocal(denom, approx=True)               # EUP slot

    ctx = _tree_sum([e[:, t:t + 1] * hs[t] for t in range(T)]) * inv  # (B, H)

    logits = (jnp.dot(ctx.astype(jnp.bfloat16), fcw_ref[...],
                      preferred_element_type=jnp.float32)
              + fcb_ref[...])                             # (B, A_PAD)
    o_ref[...] = logits.astype(o_ref.dtype)               # lane-dense store


def pack_params(w_ih, w_hh, b_ih, b_hh, fc_w, fc_b):
    """One-time packing of PyTorch-shaped params (hoisted out of the hot path).
       w_ih (4H, I), w_hh (4H, H), b_ih/b_hh (4H,), fc_w (A, H), fc_b (A,)."""
    H = w_hh.shape[1]
    A = fc_w.shape[0]
    wih_t = w_ih.T.astype(jnp.bfloat16)                   # (I, 4H)
    whh_t = w_hh.T.astype(jnp.bfloat16)                   # (H, 4H)
    bias = (b_ih + b_hh).reshape(1, 4 * H).astype(jnp.float32)
    fcw_pad = jnp.zeros((H, A_PAD), jnp.bfloat16).at[:, :A].set(
        fc_w.T.astype(jnp.bfloat16))                      # (H, A_PAD)
    fcb_pad = jnp.zeros((1, A_PAD), jnp.float32).at[:, :A].set(
        fc_b.astype(jnp.float32))                         # (1, A_PAD)
    return (wih_t, whh_t, bias, fcw_pad, fcb_pad)


@jax.jit
def rnn_reward_forward(x, packed):
    """x: (B, T, I) float32; packed = pack_params(...)."""
    wih_t, whh_t, bias, fcw_pad, fcb_pad = packed
    B, T, I = x.shape
    b_pad = max(B_PAD, ((B + 7) // 8) * 8)

    # Zero-pad batch to a sublane multiple, then time-major slab so each
    # timestep is a static, tile-aligned sublane slice.
    x_p = jnp.zeros((b_pad, T, I), jnp.float32).at[:B].set(x.astype(jnp.float32))
    x_tb = jnp.swapaxes(x_p, 0, 1).reshape(T * b_pad, I).astype(jnp.bfloat16)

    out_pad = pl.pallas_call(
        _rnn_attn_kernel,
        out_shape=jax.ShapeDtypeStruct((b_pad, A_PAD), jnp.float32),
        in_specs=[pl.BlockSpec(memory_space=pltpu.MemorySpace.VMEM)] * 6,
        out_specs=pl.BlockSpec(memory_space=pltpu.MemorySpace.VMEM),
    )(x_tb, wih_t, whh_t, bias, fcw_pad, fcb_pad)

    return out_pad[:B, :NUM_ACTIONS]


def _reference_forward(x, w_ih, w_hh, b_ih, b_hh, fc_w, fc_b):
    """Pure-JAX f32 replica of the PyTorch forward (for verification)."""
    B, T, I = x.shape
    H = w_hh.shape[1]

    def cell(carry, x_t):
        h, c = carry
        gates = x_t @ w_ih.T + b_ih + h @ w_hh.T + b_hh
        i_g, f_g, g_g, o_g = jnp.split(gates, 4, axis=-1)
        i_g = _sigmoid(i_g)
        f_g = _sigmoid(f_g)
        g_g = jnp.tanh(g_g)
        o_g = _sigmoid(o_g)
        c = f_g * c + i_g * g_g
        h = o_g * jnp.tanh(c)
        return (h, c), h

    h0 = jnp.zeros((B, H), jnp.float32)
    c0 = jnp.zeros((B, H), jnp.float32)
    (_, _), outs = lax.scan(cell, (h0, c0), jnp.swapaxes(x, 0, 1))
    out = jnp.swapaxes(outs, 0, 1)                        # (B, T, H)

    scale = 1.0 / (H ** 0.5)
    scores = jnp.einsum('bqh,bkh->bqk', out, out) * scale
    weights = jax.nn.softmax(scores, axis=-1)
    att = jnp.einsum('bqk,bkh->bqh', weights, out)
    return att[:, -1, :] @ fc_w.T + fc_b


if __name__ == "__main__":
    key = jax.random.PRNGKey(0)
    keys = jax.random.split(key, 8)

    H, I, A = HIDDEN_SIZE, INPUT_SIZE, NUM_ACTIONS
    k = 1.0 / jnp.sqrt(H)

    # Deterministic parameter init (PyTorch-style uniform(-1/sqrt(H), 1/sqrt(H))).
    w_ih = jax.random.uniform(keys[0], (4 * H, I), jnp.float32, -k, k)
    w_hh = jax.random.uniform(keys[1], (4 * H, H), jnp.float32, -k, k)
    b_ih = jax.random.uniform(keys[2], (4 * H,), jnp.float32, -k, k)
    b_hh = jax.random.uniform(keys[3], (4 * H,), jnp.float32, -k, k)
    fc_w = jax.random.uniform(keys[4], (A, H), jnp.float32, -k, k)
    fc_b = jax.random.uniform(keys[5], (A,), jnp.float32, -k, k)

    x = jax.random.normal(keys[6], (BATCH, SEQ, I), jnp.float32)

    packed = pack_params(w_ih, w_hh, b_ih, b_hh, fc_w, fc_b)  # hoisted, once

    y = rnn_reward_forward(x, packed)
    y = jax.block_until_ready(y)

    y_ref = _reference_forward(x, w_ih, w_hh, b_ih, b_hh, fc_w, fc_b)
    y_ref = jax.block_until_ready(y_ref)

    assert y.shape == (BATCH, NUM_ACTIONS), y.shape
    # bf16 MXU operands + approx reciprocal: loosened tolerance (intentional
    # accuracy/speed trade-off per the performance review).
    assert jnp.allclose(y, y_ref, atol=2e-2, rtol=2e-2), (y, y_ref)

    print("KERNEL_OK")
</pallas_src>

<mosaic_0001>
module attributes {stable_mosaic.version = 11 : i64} {
  func.func @_rnn_attn_kernel(%arg0: memref<64x16xbf16, #tpu.memory_space<vmem>>, %arg1: memref<16x256xbf16, #tpu.memory_space<vmem>>, %arg2: memref<64x256xbf16, #tpu.memory_space<vmem>>, %arg3: memref<1x256xf32, #tpu.memory_space<vmem>>, %arg4: memref<64x128xbf16, #tpu.memory_space<vmem>>, %arg5: memref<1x128xf32, #tpu.memory_space<vmem>>, %arg6: memref<8x128xf32, #tpu.memory_space<vmem>>) attributes {dimension_semantics = [], scalar_prefetch = 0 : i64, scratch_operands = 0 : i64, tpu.core_type = #tpu.core_type<tc>} {
    %c0 = arith.constant 0 : index
    %c0_0 = arith.constant 0 : index
    %0 = vector.load %arg0[%c0, %c0_0] : memref<64x16xbf16, #tpu.memory_space<vmem>>, vector<64x16xbf16>
    %c0_1 = arith.constant 0 : index
    %c0_2 = arith.constant 0 : index
    %1 = vector.load %arg1[%c0_1, %c0_2] : memref<16x256xbf16, #tpu.memory_space<vmem>>, vector<16x256xbf16>
    %cst = arith.constant dense<0.000000e+00> : vector<64x256xf32>
    %2 = tpu.matmul %0, %1, %cst {dimension_numbers = #tpu.dot_dimension_numbers<[1], [0], [0], [1], [0, 0, 1, 1], [], []>} : vector<64x16xbf16>, vector<16x256xbf16>, vector<64x256xf32> -> vector<64x256xf32>
    %c0_3 = arith.constant 0 : index
    %c0_4 = arith.constant 0 : index
    %3 = vector.load %arg3[%c0_3, %c0_4] : memref<1x256xf32, #tpu.memory_space<vmem>>, vector<1x256xf32>
    %4 = vector.broadcast %3 : vector<1x256xf32> to vector<64x256xf32>
    %5 = arith.addf %2, %4 : vector<64x256xf32>
    %c0_5 = arith.constant 0 : index
    %c0_6 = arith.constant 0 : index
    %6 = vector.load %arg2[%c0_5, %c0_6] : memref<64x256xbf16, #tpu.memory_space<vmem>>, vector<64x256xbf16>
    %7 = tpu.iota {dimensions = array<i32: 1>} : vector<8x256xi32>
    %c128_i32 = arith.constant 128 : i32
    %8 = vector.broadcast %c128_i32 : i32 to vector<8x256xi32>
    %9 = arith.cmpi sge, %7, %8 : vector<8x256xi32>
    %c192_i32 = arith.constant 192 : i32
    %10 = vector.broadcast %c192_i32 : i32 to vector<8x256xi32>
    %11 = arith.cmpi slt, %7, %10 : vector<8x256xi32>
    %12 = arith.andi %9, %11 : vector<8x256xi1>
    %cst_7 = arith.constant 0.000000e+00 : f32
    %13 = vector.broadcast %cst_7 : f32 to vector<8x64xf32>
    %cst_8 = arith.constant 0.000000e+00 : f32
    %14 = vector.broadcast %cst_8 : f32 to vector<8x64xf32>
    %15 = vector.extract_strided_slice %5 {offsets = [0, 0], sizes = [8, 256], strides = [1, 1]} : vector<64x256xf32> to vector<8x256xf32>
    %16 = arith.truncf %13 : vector<8x64xf32> to vector<8x64xbf16>
    %cst_9 = arith.constant dense<0.000000e+00> : vector<8x256xf32>
    %17 = tpu.matmul %16, %6, %cst_9 {dimension_numbers = #tpu.dot_dimension_numbers<[1], [0], [0], [1], [0, 0, 1, 1], [], []>} : vector<8x64xbf16>, vector<64x256xbf16>, vector<8x256xf32> -> vector<8x256xf32>
    %18 = arith.addf %15, %17 : vector<8x256xf32>
    %cst_10 = arith.constant 5.000000e-01 : f32
    %19 = vector.broadcast %cst_10 : f32 to vector<8x256xf32>
    %20 = arith.mulf %19, %18 : vector<8x256xf32>
    %21 = arith.select %12, %18, %20 : vector<8x256xi1>, vector<8x256xf32>
    %22 = math.tanh %21 : vector<8x256xf32>
    %cst_11 = arith.constant 5.000000e-01 : f32
    %23 = vector.broadcast %cst_11 : f32 to vector<8x256xf32>
    %24 = arith.mulf %23, %22 : vector<8x256xf32>
    %cst_12 = arith.constant 5.000000e-01 : f32
    %25 = vector.broadcast %cst_12 : f32 to vector<8x256xf32>
    %26 = arith.addf %24, %25 : vector<8x256xf32>
    %27 = arith.select %12, %22, %26 : vector<8x256xi1>, vector<8x256xf32>
    %28 = vector.extract_strided_slice %27 {offsets = [0, 0], sizes = [8, 64], strides = [1, 1]} : vector<8x256xf32> to vector<8x64xf32>
    %29 = vector.extract_strided_slice %27 {offsets = [0, 64], sizes = [8, 64], strides = [1, 1]} : vector<8x256xf32> to vector<8x64xf32>
    %30 = vector.extract_strided_slice %27 {offsets = [0, 128], sizes = [8, 64], strides = [1, 1]} : vector<8x256xf32> to vector<8x64xf32>
    %31 = vector.extract_strided_slice %27 {offsets = [0, 192], sizes = [8, 64], strides = [1, 1]} : vector<8x256xf32> to vector<8x64xf32>
    %32 = arith.mulf %29, %14 : vector<8x64xf32>
    %33 = arith.mulf %28, %30 : vector<8x64xf32>
    %34 = arith.addf %32, %33 : vector<8x64xf32>
    %35 = math.tanh %34 : vector<8x64xf32>
    %36 = arith.mulf %31, %35 : vector<8x64xf32>
    %37 = vector.extract_strided_slice %5 {offsets = [8, 0], sizes = [8, 256], strides = [1, 1]} : vector<64x256xf32> to vector<8x256xf32>
    %38 = arith.truncf %36 : vector<8x64xf32> to vector<8x64xbf16>
    %cst_13 = arith.constant dense<0.000000e+00> : vector<8x256xf32>
    %39 = tpu.matmul %38, %6, %cst_13 {dimension_numbers = #tpu.dot_dimension_numbers<[1], [0], [0], [1], [0, 0, 1, 1], [], []>} : vector<8x64xbf16>, vector<64x256xbf16>, vector<8x256xf32> -> vector<8x256xf32>
    %40 = arith.addf %37, %39 : vector<8x256xf32>
    %cst_14 = arith.constant 5.000000e-01 : f32
    %41 = vector.broadcast %cst_14 : f32 to vector<8x256xf32>
    %42 = arith.mulf %41, %40 : vector<8x256xf32>
    %43 = arith.select %12, %40, %42 : vector<8x256xi1>, vector<8x256xf32>
    %44 = math.tanh %43 : vector<8x256xf32>
    %cst_15 = arith.constant 5.000000e-01 : f32
    %45 = vector.broadcast %cst_15 : f32 to vector<8x256xf32>
    %46 = arith.mulf %45, %44 : vector<8x256xf32>
    %cst_16 = arith.constant 5.000000e-01 : f32
    %47 = vector.broadcast %cst_16 : f32 to vector<8x256xf32>
    %48 = arith.addf %46, %47 : vector<8x256xf32>
    %49 = arith.select %12, %44, %48 : vector<8x256xi1>, vector<8x256xf32>
    %50 = vector.extract_strided_slice %49 {offsets = [0, 0], sizes = [8, 64], strides = [1, 1]} : vector<8x256xf32> to vector<8x64xf32>
    %51 = vector.extract_strided_slice %49 {offsets = [0, 64], sizes = [8, 64], strides = [1, 1]} : vector<8x256xf32> to vector<8x64xf32>
    %52 = vector.extract_strided_slice %49 {offsets = [0, 128], sizes = [8, 64], strides = [1, 1]} : vector<8x256xf32> to vector<8x64xf32>
    %53 = vector.extract_strided_slice %49 {offsets = [0, 192], sizes = [8, 64], strides = [1, 1]} : vector<8x256xf32> to vector<8x64xf32>
    %54 = arith.mulf %51, %34 : vector<8x64xf32>
    %55 = arith.mulf %50, %52 : vector<8x64xf32>
    %56 = arith.addf %54, %55 : vector<8x64xf32>
    %57 = math.tanh %56 : vector<8x64xf32>
    %58 = arith.mulf %53, %57 : vector<8x64xf32>
    %59 = vector.extract_strided_slice %5 {offsets = [16, 0], sizes = [8, 256], strides = [1, 1]} : vector<64x256xf32> to vector<8x256xf32>
    %60 = arith.truncf %58 : vector<8x64xf32> to vector<8x64xbf16>
    %cst_17 = arith.constant dense<0.000000e+00> : vector<8x256xf32>
    %61 = tpu.matmul %60, %6, %cst_17 {dimension_numbers = #tpu.dot_dimension_numbers<[1], [0], [0], [1], [0, 0, 1, 1], [], []>} : vector<8x64xbf16>, vector<64x256xbf16>, vector<8x256xf32> -> vector<8x256xf32>
    %62 = arith.addf %59, %61 : vector<8x256xf32>
    %cst_18 = arith.constant 5.000000e-01 : f32
    %63 = vector.broadcast %cst_18 : f32 to vector<8x256xf32>
    %64 = arith.mulf %63, %62 : vector<8x256xf32>
    %65 = arith.select %12, %62, %64 : vector<8x256xi1>, vector<8x256xf32>
    %66 = math.tanh %65 : vector<8x256xf32>
    %cst_19 = arith.constant 5.000000e-01 : f32
    %67 = vector.broadcast %cst_19 : f32 to vector<8x256xf32>
    %68 = arith.mulf %67, %66 : vector<8x256xf32>
    %cst_20 = arith.constant 5.000000e-01 : f32
    %69 = vector.broadcast %cst_20 : f32 to vector<8x256xf32>
    %70 = arith.addf %68, %69 : vector<8x256xf32>
    %71 = arith.select %12, %66, %70 : vector<8x256xi1>, vector<8x256xf32>
    %72 = vector.extract_strided_slice %71 {offsets = [0, 0], sizes = [8, 64], strides = [1, 1]} : vector<8x256xf32> to vector<8x64xf32>
    %73 = vector.extract_strided_slice %71 {offsets = [0, 64], sizes = [8, 64], strides = [1, 1]} : vector<8x256xf32> to vector<8x64xf32>
    %74 = vector.extract_strided_slice %71 {offsets = [0, 128], sizes = [8, 64], strides = [1, 1]} : vector<8x256xf32> to vector<8x64xf32>
    %75 = vector.extract_strided_slice %71 {offsets = [0, 192], sizes = [8, 64], strides = [1, 1]} : vector<8x256xf32> to vector<8x64xf32>
    %76 = arith.mulf %73, %56 : vector<8x64xf32>
    %77 = arith.mulf %72, %74 : vector<8x64xf32>
    %78 = arith.addf %76, %77 : vector<8x64xf32>
    %79 = math.tanh %78 : vector<8x64xf32>
    %80 = arith.mulf %75, %79 : vector<8x64xf32>
    %81 = vector.extract_strided_slice %5 {offsets = [24, 0], sizes = [8, 256], strides = [1, 1]} : vector<64x256xf32> to vector<8x256xf32>
    %82 = arith.truncf %80 : vector<8x64xf32> to vector<8x64xbf16>
    %cst_21 = arith.constant dense<0.000000e+00> : vector<8x256xf32>
    %83 = tpu.matmul %82, %6, %cst_21 {dimension_numbers = #tpu.dot_dimension_numbers<[1], [0], [0], [1], [0, 0, 1, 1], [], []>} : vector<8x64xbf16>, vector<64x256xbf16>, vector<8x256xf32> -> vector<8x256xf32>
    %84 = arith.addf %81, %83 : vector<8x256xf32>
    %cst_22 = arith.constant 5.000000e-01 : f32
    %85 = vector.broadcast %cst_22 : f32 to vector<8x256xf32>
    %86 = arith.mulf %85, %84 : vector<8x256xf32>
    %87 = arith.select %12, %84, %86 : vector<8x256xi1>, vector<8x256xf32>
    %88 = math.tanh %87 : vector<8x256xf32>
    %cst_23 = arith.constant 5.000000e-01 : f32
    %89 = vector.broadcast %cst_23 : f32 to vector<8x256xf32>
    %90 = arith.mulf %89, %88 : vector<8x256xf32>
    %cst_24 = arith.constant 5.000000e-01 : f32
    %91 = vector.broadcast %cst_24 : f32 to vector<8x256xf32>
    %92 = arith.addf %90, %91 : vector<8x256xf32>
    %93 = arith.select %12, %88, %92 : vector<8x256xi1>, vector<8x256xf32>
    %94 = vector.extract_strided_slice %93 {offsets = [0, 0], sizes = [8, 64], strides = [1, 1]} : vector<8x256xf32> to vector<8x64xf32>
    %95 = vector.extract_strided_slice %93 {offsets = [0, 64], sizes = [8, 64], strides = [1, 1]} : vector<8x256xf32> to vector<8x64xf32>
    %96 = vector.extract_strided_slice %93 {offsets = [0, 128], sizes = [8, 64], strides = [1, 1]} : vector<8x256xf32> to vector<8x64xf32>
    %97 = vector.extract_strided_slice %93 {offsets = [0, 192], sizes = [8, 64], strides = [1, 1]} : vector<8x256xf32> to vector<8x64xf32>
    %98 = arith.mulf %95, %78 : vector<8x64xf32>
    %99 = arith.mulf %94, %96 : vector<8x64xf32>
    %100 = arith.addf %98, %99 : vector<8x64xf32>
    %101 = math.tanh %100 : vector<8x64xf32>
    %102 = arith.mulf %97, %101 : vector<8x64xf32>
    %103 = vector.extract_strided_slice %5 {offsets = [32, 0], sizes = [8, 256], strides = [1, 1]} : vector<64x256xf32> to vector<8x256xf32>
    %104 = arith.truncf %102 : vector<8x64xf32> to vector<8x64xbf16>
    %cst_25 = arith.constant dense<0.000000e+00> : vector<8x256xf32>
    %105 = tpu.matmul %104, %6, %cst_25 {dimension_numbers = #tpu.dot_dimension_numbers<[1], [0], [0], [1], [0, 0, 1, 1], [], []>} : vector<8x64xbf16>, vector<64x256xbf16>, vector<8x256xf32> -> vector<8x256xf32>
    %106 = arith.addf %103, %105 : vector<8x256xf32>
    %cst_26 = arith.constant 5.000000e-01 : f32
    %107 = vector.broadcast %cst_26 : f32 to vector<8x256xf32>
    %108 = arith.mulf %107, %106 : vector<8x256xf32>
    %109 = arith.select %12, %106, %108 : vector<8x256xi1>, vector<8x256xf32>
    %110 = math.tanh %109 : vector<8x256xf32>
    %cst_27 = arith.constant 5.000000e-01 : f32
    %111 = vector.broadcast %cst_27 : f32 to vector<8x256xf32>
    %112 = arith.mulf %111, %110 : vector<8x256xf32>
    %cst_28 = arith.constant 5.000000e-01 : f32
    %113 = vector.broadcast %cst_28 : f32 to vector<8x256xf32>
    %114 = arith.addf %112, %113 : vector<8x256xf32>
    %115 = arith.select %12, %110, %114 : vector<8x256xi1>, vector<8x256xf32>
    %116 = vector.extract_strided_slice %115 {offsets = [0, 0], sizes = [8, 64], strides = [1, 1]} : vector<8x256xf32> to vector<8x64xf32>
    %117 = vector.extract_strided_slice %115 {offsets = [0, 64], sizes = [8, 64], strides = [1, 1]} : vector<8x256xf32> to vector<8x64xf32>
    %118 = vector.extract_strided_slice %115 {offsets = [0, 128], sizes = [8, 64], strides = [1, 1]} : vector<8x256xf32> to vector<8x64xf32>
    %119 = vector.extract_strided_slice %115 {offsets = [0, 192], sizes = [8, 64], strides = [1, 1]} : vector<8x256xf32> to vector<8x64xf32>
    %120 = arith.mulf %117, %100 : vector<8x64xf32>
    %121 = arith.mulf %116, %118 : vector<8x64xf32>
    %122 = arith.addf %120, %121 : vector<8x64xf32>
    %123 = math.tanh %122 : vector<8x64xf32>
    %124 = arith.mulf %119, %123 : vector<8x64xf32>
    %125 = vector.extract_strided_slice %5 {offsets = [40, 0], sizes = [8, 256], strides = [1, 1]} : vector<64x256xf32> to vector<8x256xf32>
    %126 = arith.truncf %124 : vector<8x64xf32> to vector<8x64xbf16>
    %cst_29 = arith.constant dense<0.000000e+00> : vector<8x256xf32>
    %127 = tpu.matmul %126, %6, %cst_29 {dimension_numbers = #tpu.dot_dimension_numbers<[1], [0], [0], [1], [0, 0, 1, 1], [], []>} : vector<8x64xbf16>, vector<64x256xbf16>, vector<8x256xf32> -> vector<8x256xf32>
    %128 = arith.addf %125, %127 : vector<8x256xf32>
    %cst_30 = arith.constant 5.000000e-01 : f32
    %129 = vector.broadcast %cst_30 : f32 to vector<8x256xf32>
    %130 = arith.mulf %129, %128 : vector<8x256xf32>
    %131 = arith.select %12, %128, %130 : vector<8x256xi1>, vector<8x256xf32>
    %132 = math.tanh %131 : vector<8x256xf32>
    %cst_31 = arith.constant 5.000000e-01 : f32
    %133 = vector.broadcast %cst_31 : f32 to vector<8x256xf32>
    %134 = arith.mulf %133, %132 : vector<8x256xf32>
    %cst_32 = arith.constant 5.000000e-01 : f32
    %135 = vector.broadcast %cst_32 : f32 to vector<8x256xf32>
    %136 = arith.addf %134, %135 : vector<8x256xf32>
    %137 = arith.select %12, %132, %136 : vector<8x256xi1>, vector<8x256xf32>
    %138 = vector.extract_strided_slice %137 {offsets = [0, 0], sizes = [8, 64], strides = [1, 1]} : vector<8x256xf32> to vector<8x64xf32>
    %139 = vector.extract_strided_slice %137 {offsets = [0, 64], sizes = [8, 64], strides = [1, 1]} : vector<8x256xf32> to vector<8x64xf32>
    %140 = vector.extract_strided_slice %137 {offsets = [0, 128], sizes = [8, 64], strides = [1, 1]} : vector<8x256xf32> to vector<8x64xf32>
    %141 = vector.extract_strided_slice %137 {offsets = [0, 192], sizes = [8, 64], strides = [1, 1]} : vector<8x256xf32> to vector<8x64xf32>
    %142 = arith.mulf %139, %122 : vector<8x64xf32>
    %143 = arith.mulf %138, %140 : vector<8x64xf32>
    %144 = arith.addf %142, %143 : vector<8x64xf32>
    %145 = math.tanh %144 : vector<8x64xf32>
    %146 = arith.mulf %141, %145 : vector<8x64xf32>
    %147 = vector.extract_strided_slice %5 {offsets = [48, 0], sizes = [8, 256], strides = [1, 1]} : vector<64x256xf32> to vector<8x256xf32>
    %148 = arith.truncf %146 : vector<8x64xf32> to vector<8x64xbf16>
    %cst_33 = arith.constant dense<0.000000e+00> : vector<8x256xf32>
    %149 = tpu.matmul %148, %6, %cst_33 {dimension_numbers = #tpu.dot_dimension_numbers<[1], [0], [0], [1], [0, 0, 1, 1], [], []>} : vector<8x64xbf16>, vector<64x256xbf16>, vector<8x256xf32> -> vector<8x256xf32>
    %150 = arith.addf %147, %149 : vector<8x256xf32>
    %cst_34 = arith.constant 5.000000e-01 : f32
    %151 = vector.broadcast %cst_34 : f32 to vector<8x256xf32>
    %152 = arith.mulf %151, %150 : vector<8x256xf32>
    %153 = arith.select %12, %150, %152 : vector<8x256xi1>, vector<8x256xf32>
    %154 = math.tanh %153 : vector<8x256xf32>
    %cst_35 = arith.constant 5.000000e-01 : f32
    %155 = vector.broadcast %cst_35 : f32 to vector<8x256xf32>
    %156 = arith.mulf %155, %154 : vector<8x256xf32>
    %cst_36 = arith.constant 5.000000e-01 : f32
    %157 = vector.broadcast %cst_36 : f32 to vector<8x256xf32>
    %158 = arith.addf %156, %157 : vector<8x256xf32>
    %159 = arith.select %12, %154, %158 : vector<8x256xi1>, vector<8x256xf32>
    %160 = vector.extract_strided_slice %159 {offsets = [0, 0], sizes = [8, 64], strides = [1, 1]} : vector<8x256xf32> to vector<8x64xf32>
    %161 = vector.extract_strided_slice %159 {offsets = [0, 64], sizes = [8, 64], strides = [1, 1]} : vector<8x256xf32> to vector<8x64xf32>
    %162 = vector.extract_strided_slice %159 {offsets = [0, 128], sizes = [8, 64], strides = [1, 1]} : vector<8x256xf32> to vector<8x64xf32>
    %163 = vector.extract_strided_slice %159 {offsets = [0, 192], sizes = [8, 64], strides = [1, 1]} : vector<8x256xf32> to vector<8x64xf32>
    %164 = arith.mulf %161, %144 : vector<8x64xf32>
    %165 = arith.mulf %160, %162 : vector<8x64xf32>
    %166 = arith.addf %164, %165 : vector<8x64xf32>
    %167 = math.tanh %166 : vector<8x64xf32>
    %168 = arith.mulf %163, %167 : vector<8x64xf32>
    %169 = vector.extract_strided_slice %5 {offsets = [56, 0], sizes = [8, 256], strides = [1, 1]} : vector<64x256xf32> to vector<8x256xf32>
    %170 = arith.truncf %168 : vector<8x64xf32> to vector<8x64xbf16>
    %cst_37 = arith.constant dense<0.000000e+00> : vector<8x256xf32>
    %171 = tpu.matmul %170, %6, %cst_37 {dimension_numbers = #tpu.dot_dimension_numbers<[1], [0], [0], [1], [0, 0, 1, 1], [], []>} : vector<8x64xbf16>, vector<64x256xbf16>, vector<8x256xf32> -> vector<8x256xf32>
    %172 = arith.addf %169, %171 : vector<8x256xf32>
    %cst_38 = arith.constant 5.000000e-01 : f32
    %173 = vector.broadcast %cst_38 : f32 to vector<8x256xf32>
    %174 = arith.mulf %173, %172 : vector<8x256xf32>
    %175 = arith.select %12, %172, %174 : vector<8x256xi1>, vector<8x256xf32>
    %176 = math.tanh %175 : vector<8x256xf32>
    %cst_39 = arith.constant 5.000000e-01 : f32
    %177 = vector.broadcast %cst_39 : f32 to vector<8x256xf32>
    %178 = arith.mulf %177, %176 : vector<8x256xf32>
    %cst_40 = arith.constant 5.000000e-01 : f32
    %179 = vector.broadcast %cst_40 : f32 to vector<8x256xf32>
    %180 = arith.addf %178, %179 : vector<8x256xf32>
    %181 = arith.select %12, %176, %180 : vector<8x256xi1>, vector<8x256xf32>
    %182 = vector.extract_strided_slice %181 {offsets = [0, 0], sizes = [8, 64], strides = [1, 1]} : vector<8x256xf32> to vector<8x64xf32>
    %183 = vector.extract_strided_slice %181 {offsets = [0, 64], sizes = [8, 64], strides = [1, 1]} : vector<8x256xf32> to vector<8x64xf32>
    %184 = vector.extract_strided_slice %181 {offsets = [0, 128], sizes = [8, 64], strides = [1, 1]} : vector<8x256xf32> to vector<8x64xf32>
    %185 = vector.extract_strided_slice %181 {offsets = [0, 192], sizes = [8, 64], strides = [1, 1]} : vector<8x256xf32> to vector<8x64xf32>
    %186 = arith.mulf %183, %166 : vector<8x64xf32>
    %187 = arith.mulf %182, %184 : vector<8x64xf32>
    %188 = arith.addf %186, %187 : vector<8x64xf32>
    %189 = math.tanh %188 : vector<8x64xf32>
    %190 = arith.mulf %185, %189 : vector<8x64xf32>
    %191 = tpu.concatenate %36, %58, %80, %102, %124, %146, %168, %190 in 0 : vector<8x64xf32>, vector<8x64xf32>, vector<8x64xf32>, vector<8x64xf32>, vector<8x64xf32>, vector<8x64xf32>, vector<8x64xf32>, vector<8x64xf32> -> vector<64x64xf32>
    %192 = tpu.concatenate %190, %190, %190, %190, %190, %190, %190, %190 in 0 : vector<8x64xf32>, vector<8x64xf32>, vector<8x64xf32>, vector<8x64xf32>, vector<8x64xf32>, vector<8x64xf32>, vector<8x64xf32>, vector<8x64xf32> -> vector<64x64xf32>
    %193 = arith.mulf %191, %192 : vector<64x64xf32>
    %cst_41 = arith.constant dense<0.000000e+00> : vector<64xf32>
    %194 = vector.multi_reduction <add>, %193, %cst_41 [1] : vector<64x64xf32> to vector<64xf32>
    %195 = vector.shape_cast %194 : vector<64xf32> to vector<64x1xf32>
    %cst_42 = arith.constant 1.250000e-01 : f32
    %196 = vector.broadcast %cst_42 : f32 to vector<64x1xf32>
    %197 = arith.mulf %195, %196 : vector<64x1xf32>
    %198 = vector.extract_strided_slice %197 {offsets = [0, 0], sizes = [8, 1], strides = [1, 1]} : vector<64x1xf32> to vector<8x1xf32>
    %199 = vector.extract_strided_slice %197 {offsets = [8, 0], sizes = [8, 1], strides = [1, 1]} : vector<64x1xf32> to vector<8x1xf32>
    %200 = vector.extract_strided_slice %197 {offsets = [16, 0], sizes = [8, 1], strides = [1, 1]} : vector<64x1xf32> to vector<8x1xf32>
    %201 = vector.extract_strided_slice %197 {offsets = [24, 0], sizes = [8, 1], strides = [1, 1]} : vector<64x1xf32> to vector<8x1xf32>
    %202 = vector.extract_strided_slice %197 {offsets = [32, 0], sizes = [8, 1], strides = [1, 1]} : vector<64x1xf32> to vector<8x1xf32>
    %203 = vector.extract_strided_slice %197 {offsets = [40, 0], sizes = [8, 1], strides = [1, 1]} : vector<64x1xf32> to vector<8x1xf32>
    %204 = vector.extract_strided_slice %197 {offsets = [48, 0], sizes = [8, 1], strides = [1, 1]} : vector<64x1xf32> to vector<8x1xf32>
    %205 = vector.extract_strided_slice %197 {offsets = [56, 0], sizes = [8, 1], strides = [1, 1]} : vector<64x1xf32> to vector<8x1xf32>
    %206 = tpu.concatenate %198, %199, %200, %201, %202, %203, %204, %205 in 1 : vector<8x1xf32>, vector<8x1xf32>, vector<8x1xf32>, vector<8x1xf32>, vector<8x1xf32>, vector<8x1xf32>, vector<8x1xf32>, vector<8x1xf32> -> vector<8x8xf32>
    %cst_43 = arith.constant dense<0xFF800000> : vector<8xf32>
    %207 = vector.multi_reduction <maximumf>, %206, %cst_43 [1] : vector<8x8xf32> to vector<8xf32>
    %208 = vector.shape_cast %207 : vector<8xf32> to vector<8x1xf32>
    %209 = vector.broadcast %208 : vector<8x1xf32> to vector<8x8xf32>
    %210 = arith.subf %206, %209 : vector<8x8xf32>
    %211 = math.exp %210 : vector<8x8xf32>
    %cst_44 = arith.constant dense<0.000000e+00> : vector<8xf32>
    %212 = vector.multi_reduction <add>, %211, %cst_44 [1] : vector<8x8xf32> to vector<8xf32>
    %213 = vector.shape_cast %212 : vector<8xf32> to vector<8x1xf32>
    %214 = tpu.reciprocal %213 {approx = true} : vector<8x1xf32> -> vector<8x1xf32>
    %215 = vector.extract_strided_slice %211 {offsets = [0, 0], sizes = [8, 1], strides = [1, 1]} : vector<8x8xf32> to vector<8x1xf32>
    %216 = vector.broadcast %215 : vector<8x1xf32> to vector<8x64xf32>
    %217 = arith.mulf %216, %36 : vector<8x64xf32>
    %218 = vector.extract_strided_slice %211 {offsets = [0, 1], sizes = [8, 1], strides = [1, 1]} : vector<8x8xf32> to vector<8x1xf32>
    %219 = vector.broadcast %218 : vector<8x1xf32> to vector<8x64xf32>
    %220 = arith.mulf %219, %58 : vector<8x64xf32>
    %221 = vector.extract_strided_slice %211 {offsets = [0, 2], sizes = [8, 1], strides = [1, 1]} : vector<8x8xf32> to vector<8x1xf32>
    %222 = vector.broadcast %221 : vector<8x1xf32> to vector<8x64xf32>
    %223 = arith.mulf %222, %80 : vector<8x64xf32>
    %224 = vector.extract_strided_slice %211 {offsets = [0, 3], sizes = [8, 1], strides = [1, 1]} : vector<8x8xf32> to vector<8x1xf32>
    %225 = vector.broadcast %224 : vector<8x1xf32> to vector<8x64xf32>
    %226 = arith.mulf %225, %102 : vector<8x64xf32>
    %227 = vector.extract_strided_slice %211 {offsets = [0, 4], sizes = [8, 1], strides = [1, 1]} : vector<8x8xf32> to vector<8x1xf32>
    %228 = vector.broadcast %227 : vector<8x1xf32> to vector<8x64xf32>
    %229 = arith.mulf %228, %124 : vector<8x64xf32>
    %230 = vector.extract_strided_slice %211 {offsets = [0, 5], sizes = [8, 1], strides = [1, 1]} : vector<8x8xf32> to vector<8x1xf32>
    %231 = vector.broadcast %230 : vector<8x1xf32> to vector<8x64xf32>
    %232 = arith.mulf %231, %146 : vector<8x64xf32>
    %233 = vector.extract_strided_slice %211 {offsets = [0, 6], sizes = [8, 1], strides = [1, 1]} : vector<8x8xf32> to vector<8x1xf32>
    %234 = vector.broadcast %233 : vector<8x1xf32> to vector<8x64xf32>
    %235 = arith.mulf %234, %168 : vector<8x64xf32>
    %236 = vector.extract_strided_slice %211 {offsets = [0, 7], sizes = [8, 1], strides = [1, 1]} : vector<8x8xf32> to vector<8x1xf32>
    %237 = vector.broadcast %236 : vector<8x1xf32> to vector<8x64xf32>
    %238 = arith.mulf %237, %190 : vector<8x64xf32>
    %239 = arith.addf %217, %220 : vector<8x64xf32>
    %240 = arith.addf %223, %226 : vector<8x64xf32>
    %241 = arith.addf %229, %232 : vector<8x64xf32>
    %242 = arith.addf %235, %238 : vector<8x64xf32>
    %243 = arith.addf %239, %240 : vector<8x64xf32>
    %244 = arith.addf %241, %242 : vector<8x64xf32>
    %245 = arith.addf %243, %244 : vector<8x64xf32>
    %246 = vector.broadcast %214 : vector<8x1xf32> to vector<8x64xf32>
    %247 = arith.mulf %245, %246 : vector<8x64xf32>
    %248 = arith.truncf %247 : vector<8x64xf32> to vector<8x64xbf16>
    %c0_45 = arith.constant 0 : index
    %c0_46 = arith.constant 0 : index
    %249 = vector.load %arg4[%c0_45, %c0_46] : memref<64x128xbf16, #tpu.memory_space<vmem>>, vector<64x128xbf16>
    %cst_47 = arith.constant dense<0.000000e+00> : vector<8x128xf32>
    %250 = tpu.matmul %248, %249, %cst_47 {dimension_numbers = #tpu.dot_dimension_numbers<[1], [0], [0], [1], [0, 0, 1, 1], [], []>} : vector<8x64xbf16>, vector<64x128xbf16>, vector<8x128xf32> -> vector<8x128xf32>
    %c0_48 = arith.constant 0 : index
    %c0_49 = arith.constant 0 : index
    %251 = vector.load %arg5[%c0_48, %c0_49] : memref<1x128xf32, #tpu.memory_space<vmem>>, vector<1x128xf32>
    %252 = vector.broadcast %251 : vector<1x128xf32> to vector<8x128xf32>
    %253 = arith.addf %250, %252 : vector<8x128xf32>
    %c0_50 = arith.constant 0 : index
    %c0_51 = arith.constant 0 : index
    %254 = vector.load %arg6[%c0_50, %c0_51] : memref<8x128xf32, #tpu.memory_space<vmem>>, vector<8x128xf32>
    tpu.vector_store %arg6[%c0_50, %c0_51], %253 {strides = array<i32>} : memref<8x128xf32, #tpu.memory_space<vmem>>, vector<8x128xf32>,
    return
  }
}

</mosaic_0001>

<llo_original>
// kernel: rnn_reward_forward.1
$region0: #{rnn_reward_forward.1}
  #allocation0 [shape = 'u32[]', space=smem, size = 0x4, offset = 0x4, fixed_abs, tag = 'smem constant byte address 0x4 - core index']
  #allocation1 [shape = 'u32[144,128]{1,0:T(1,128)}', space=vmem, size = 0x12000, scoped, tag = 'internal scratch']
  %s0 = inlined_call_operand.vmem [shape: bf16[64,16], index: 0, kind: input, shape index: {}]
  %s1 = inlined_call_operand.vmem [shape: bf16[16,256], index: 1, kind: input, shape index: {}]
  %s2 = inlined_call_operand.vmem [shape: bf16[64,256], index: 2, kind: input, shape index: {}]
  %s3 = inlined_call_operand.vmem [shape: f32[1,256], index: 3, kind: input, shape index: {}]
  %s4 = inlined_call_operand.vmem [shape: bf16[64,128], index: 4, kind: input, shape index: {}]
  %s5 = inlined_call_operand.vmem [shape: f32[1,128], index: 5, kind: input, shape index: {}]
  %s6 = inlined_call_operand.vmem [shape: f32[8,128], index: 6, kind: output, shape index: {}]
  %s7 = sld [smem:[#allocation0]]
  $region34: #{rnn_reward_forward.1} parent=0
    _
  %s9 = ssub.s32 1, %s7
  %s10 = scalar_select 0, %s9, %s7
  // Predicated region
  $region2: #{rnn_reward_forward.1} parent=0 // pred_check
    _
  $region3: #{rnn_reward_forward.1} parent=0 // pred_check_branch
    %12 = sbr.rel (0) target = $region5
  $region4: #{rnn_reward_forward.1} parent=0 // pred_region
    _
  $region5: #{rnn_reward_forward.1} parent=0 // pred_fallthru
    _
  // Predicated region
  $region6: #{rnn_reward_forward.1} parent=0 // pred_check
    _
  $region7: #{rnn_reward_forward.1} parent=0 // pred_check_branch
    %14 = sbr.rel (0) target = $region9
  $region8: #{rnn_reward_forward.1} parent=0 // pred_region
    _
  $region9: #{rnn_reward_forward.1} parent=0 // pred_fallthru
    _
  // Predicated region
  $region10: #{rnn_reward_forward.1} parent=0 // pred_check
    _
  $region11: #{rnn_reward_forward.1} parent=0 // pred_check_branch
    %16 = sbr.rel (0) target = $region13
  $region12: #{rnn_reward_forward.1} parent=0 // pred_region
    _
  $region13: #{rnn_reward_forward.1} parent=0 // pred_fallthru
    _
  // Predicated region
  $region14: #{rnn_reward_forward.1} parent=0 // pred_check
    _
  $region15: #{rnn_reward_forward.1} parent=0 // pred_check_branch
    %18 = sbr.rel (0) target = $region17
  $region16: #{rnn_reward_forward.1} parent=0 // pred_region
    _
  $region17: #{rnn_reward_forward.1} parent=0 // pred_fallthru
    _
  // Predicated region
  $region18: #{rnn_reward_forward.1} parent=0 // pred_check
    _
  $region19: #{rnn_reward_forward.1} parent=0 // pred_check_branch
    %20 = sbr.rel (0) target = $region21
  $region20: #{rnn_reward_forward.1} parent=0 // pred_region
    _
  $region21: #{rnn_reward_forward.1} parent=0 // pred_fallthru
    _
  // Predicated region
  $region22: #{rnn_reward_forward.1} parent=0 // pred_check
    _
  $region23: #{rnn_reward_forward.1} parent=0 // pred_check_branch
    %22 = sbr.rel (0) target = $region25
  $region24: #{rnn_reward_forward.1} parent=0 // pred_region
    _
  $region25: #{rnn_reward_forward.1} parent=0 // pred_fallthru
    _
  %v24 = vld [vmem:[%s0] sm:$0xf]
  %v25 = vld [vmem:[%s0 + $0x4] sm:$0xf]
  %v26 = vld [vmem:[%s0 + $0x8] sm:$0xf]
  %v27 = vld [vmem:[%s0 + $0xc] sm:$0xf]
  %v28 = vld [vmem:[%s0 + $0x10] sm:$0xf]
  %v29 = vld [vmem:[%s0 + $0x14] sm:$0xf]
  %v30 = vld [vmem:[%s0 + $0x18] sm:$0xf]
  %v31 = vld [vmem:[%s0 + $0x1c] sm:$0xf]
  %v32 = vld [vmem:[%s1] sm:$0xff]
  %v33 = vld [vmem:[%s1 + $0x8] sm:$0xff]
  %v34 = vld [vmem:[%s3] sm:$0x3]
  %v36 = vlaneseq
  %v37 = vshrl.u32 %v36, 7
  %v38 = vsub.s32 0, %v37
  %v39 = vrot.slane %v34, %v38
  %v40 = vlaneseq
  %v41 = vshrl.u32 %v40, 7
  %v42 = vsub.s32 1, %v41
  %v43 = vrot.slane %v34, %v42
  %v54 = vunpack.c.l.b16 %v24
  %v55 = vunpack.c.l.b16 %v25
  %v56 = vunpack.c.l.b16 %v26
  %v57 = vunpack.c.l.b16 %v27
  %v58 = vunpack.c.l.b16 %v28
  %v59 = vunpack.c.l.b16 %v29
  %v60 = vunpack.c.l.b16 %v30
  %v61 = vunpack.c.l.b16 %v31
  %v62 = vpack.c.b16 %v55, %v54
  %v63 = vpack.c.b16 %v57, %v56
  %v64 = vpack.c.b16 %v59, %v58
  %v65 = vpack.c.b16 %v61, %v60
  %v68 = vunpack.c.l.b16 %v32
  %v69 = vunpack.c.h.b16 %v32
  %v70 = vunpack.c.l.b16 %v33
  %v71 = vunpack.c.h.b16 %v33
  %v72 = vpack.c.b16 %v70, %v68
  %v73 = vpack.c.b16 %v71, %v69
  %vm76 = vcmask 130048
  %v78 = vsel %vm76, %v62, 0
  %v81 = vsel %vm76, %v63, 0
  %v84 = vsel %vm76, %v64, 0
  %v87 = vsel %vm76, %v65, 0
  %89 = vmatprep.subr.bf16.mxu0 %v73
  %90 = vmatpush1.bf16.msra.mxu0 %v72
  %91 = vmatprep.subr.bf16.mxu0 0
  %92 = vmatpush1.bf16.msra.mxu0 0
  %93 = vmatprep.subr.bf16.mxu0 0
  %94 = vmatpush1.bf16.msra.mxu0 0
  %95 = vmatprep.subr.bf16.mxu0 0
  %96 = vmatpush1.bf16.msra.mxu0 0
  %97 = vmatprep.subr.bf16.mxu0 0
  %98 = vmatpush1.bf16.msra.mxu0 0
  %99 = vmatprep.subr.bf16.mxu0 0
  %100 = vmatpush1.bf16.msra.mxu0 0
  %101 = vmatprep.subr.bf16.mxu0 0
  %102 = vmatpush1.bf16.msra.mxu0 0
  %103 = vmatprep.subr.bf16.mxu0 0
  %104 = vmatpush1.bf16.msra.mxu0 0
  %105 = vmatprep.subr.bf16.mxu0 0
  %106 = vmatpush1.bf16.msra.mxu0 0
  %107 = vmatprep.subr.bf16.mxu0 0
  %108 = vmatpush1.bf16.msra.mxu0 0
  %109 = vmatprep.subr.bf16.mxu0 0
  %110 = vmatpush1.bf16.msra.mxu0 0
  %111 = vmatprep.subr.bf16.mxu0 0
  %112 = vmatpush1.bf16.msra.mxu0 0
  %113 = vmatprep.subr.bf16.mxu0 0
  %114 = vmatpush1.bf16.msra.mxu0 0
  %115 = vmatprep.subr.bf16.mxu0 0
  %116 = vmatpush1.bf16.msra.mxu0 0
  %117 = vmatprep.subr.bf16.mxu0 0
  %118 = vmatpush1.bf16.msra.mxu0 0
  %119 = vmatprep.subr.bf16.mxu0 0
  %120 = vmatpush1.bf16.msra.mxu0 0
  %121 = vmatprep.mubr.bf16.mxu0 0
  %122 = vmatmul.mubr.bf16.gmra.mrb[0].mxu0 %v78
  %v123 = vpop.f32.mrb[0].mxu0
  %v124 = vadd.f32 %v39, %v123
  %v125 = vpop.f32.mrb[0].mxu0
  %v126 = vadd.f32 %v43, %v125
  %v127 = vpop.f32.mrb[0].mxu0
  %v128 = vadd.f32 %v39, %v127
  %v129 = vpop.f32.mrb[0].mxu0
  %v130 = vadd.f32 %v43, %v129
  %131 = vmatprep.mubr.bf16.mxu0 0
  %132 = vmatmul.mubr.bf16.gmra.mrb[0].mxu0 %v81
  %v133 = vpop.f32.mrb[0].mxu0
  %v134 = vadd.f32 %v39, %v133
  %v135 = vpop.f32.mrb[0].mxu0
  %v136 = vadd.f32 %v43, %v135
  %v137 = vpop.f32.mrb[0].mxu0
  %v138 = vadd.f32 %v39, %v137
  %v139 = vpop.f32.mrb[0].mxu0
  %v140 = vadd.f32 %v43, %v139
  %141 = vmatprep.mubr.bf16.mxu0 0
  %142 = vmatmul.mubr.bf16.gmra.mrb[0].mxu0 %v84
  %v143 = vpop.f32.mrb[0].mxu0
  %v144 = vadd.f32 %v39, %v143
  %v145 = vpop.f32.mrb[0].mxu0
  %v146 = vadd.f32 %v43, %v145
  %v147 = vpop.f32.mrb[0].mxu0
  %v148 = vadd.f32 %v39, %v147
  %v149 = vpop.f32.mrb[0].mxu0
  %v150 = vadd.f32 %v43, %v149
  %151 = vmatprep.mubr.bf16.mxu0 0
  %152 = vmatmul.mubr.bf16.gmra.mrb[0].mxu0 %v87
  %v153 = vpop.f32.mrb[0].mxu0
  %v154 = vadd.f32 %v39, %v153
  %v155 = vpop.f32.mrb[0].mxu0
  %v156 = vadd.f32 %v43, %v155
  %v157 = vpop.f32.mrb[0].mxu0
  %v158 = vadd.f32 %v39, %v157
  %v159 = vpop.f32.mrb[0].mxu0
  %v160 = vadd.f32 %v43, %v159
  %161 = vdwg.mxu0
  %v162 = vld [vmem:[%s2] sm:$0xff]
  %v163 = vld [vmem:[%s2 + $0x8] sm:$0xff]
  %v164 = vld [vmem:[%s2 + $0x10] sm:$0xff]
  %v165 = vld [vmem:[%s2 + $0x18] sm:$0xff]
  %v166 = vld [vmem:[%s2 + $0x20] sm:$0xff]
  %v167 = vld [vmem:[%s2 + $0x28] sm:$0xff]
  %v168 = vld [vmem:[%s2 + $0x30] sm:$0xff]
  %v169 = vld [vmem:[%s2 + $0x38] sm:$0xff]
  %v170 = vlaneseq
  %v171 = vand.u32 %v170, 127
  %v172 = vadd.s32 %v171, 128
  %vm173 = vcmp.ge.s32.totalorder %v171, 128
  %vm174 = vcmp.ge.s32.totalorder %v172, 128
  %vm175 = vcmp.lt.s32.totalorder %v171, 192
  %vm176 = vcmp.lt.s32.totalorder %v172, 192
  %vm177 = vmand %vm173, %vm175
  %vm178 = vmand %vm174, %vm176
  %v187 = vunpack.c.l.b16 %v162
  %v188 = vunpack.c.h.b16 %v162
  %v189 = vunpack.c.l.b16 %v163
  %v190 = vunpack.c.h.b16 %v163
  %v191 = vunpack.c.l.b16 %v164
  %v192 = vunpack.c.h.b16 %v164
  %v193 = vunpack.c.l.b16 %v165
  %v194 = vunpack.c.h.b16 %v165
  %v195 = vunpack.c.l.b16 %v166
  %v196 = vunpack.c.h.b16 %v166
  %v197 = vunpack.c.l.b16 %v167
  %v198 = vunpack.c.h.b16 %v167
  %v199 = vunpack.c.l.b16 %v168
  %v200 = vunpack.c.h.b16 %v168
  %v201 = vunpack.c.l.b16 %v169
  %v202 = vunpack.c.h.b16 %v169
  %v203 = vpack.c.b16 %v189, %v187
  %v204 = vpack.c.b16 %v190, %v188
  %v205 = vpack.c.b16 %v193, %v191
  %v206 = vpack.c.b16 %v194, %v192
  %v207 = vpack.c.b16 %v197, %v195
  %v208 = vpack.c.b16 %v198, %v196
  %v209 = vpack.c.b16 %v201, %v199
  %v210 = vpack.c.b16 %v202, %v200
  %vm219 = vcmask 523264
  %v221 = vsel %vm219, 0, 0
  %223 = vmatprep.subr.bf16.mxu0 %v204
  %224 = vmatpush1.bf16.msra.mxu0 %v203
  %225 = vmatprep.subr.bf16.mxu0 %v206
  %226 = vmatpush1.bf16.msra.mxu0 %v205
  %227 = vmatprep.subr.bf16.mxu0 %v208
  %228 = vmatpush1.bf16.msra.mxu0 %v207
  %229 = vmatprep.subr.bf16.mxu0 %v210
  %230 = vmatpush1.bf16.msra.mxu0 %v209
  %231 = vmatprep.subr.bf16.mxu0 0
  %232 = vmatpush1.bf16.msra.mxu0 0
  %233 = vmatprep.subr.bf16.mxu0 0
  %234 = vmatpush1.bf16.msra.mxu0 0
  %235 = vmatprep.subr.bf16.mxu0 0
  %236 = vmatpush1.bf16.msra.mxu0 0
  %237 = vmatprep.subr.bf16.mxu0 0
  %238 = vmatpush1.bf16.msra.mxu0 0
  %239 = vmatprep.subr.bf16.mxu0 0
  %240 = vmatpush1.bf16.msra.mxu0 0
  %241 = vmatprep.subr.bf16.mxu0 0
  %242 = vmatpush1.bf16.msra.mxu0 0
  %243 = vmatprep.subr.bf16.mxu0 0
  %244 = vmatpush1.bf16.msra.mxu0 0
  %245 = vmatprep.subr.bf16.mxu0 0
  %246 = vmatpush1.bf16.msra.mxu0 0
  %247 = vmatprep.subr.bf16.mxu0 0
  %248 = vmatpush1.bf16.msra.mxu0 0
  %249 = vmatprep.subr.bf16.mxu0 0
  %250 = vmatpush1.bf16.msra.mxu0 0
  %251 = vmatprep.subr.bf16.mxu0 0
  %252 = vmatpush1.bf16.msra.mxu0 0
  %253 = vmatprep.subr.bf16.mxu0 0
  %254 = vmatpush1.bf16.msra.mxu0 0
  %255 = vmatprep.mubr.bf16.mxu0 0
  %256 = vmatmul.mubr.bf16.gmra.mrb[0].mxu0 %v221
  %v257 = vpop.f32.mrb[0].mxu0
  %v258 = vadd.f32 0.0, %v257
  %v259 = vpop.f32.mrb[0].mxu0
  %v260 = vadd.f32 0.0, %v259
  %v261 = vpop.f32.mrb[0].mxu0
  %v262 = vpop.f32.mrb[0].mxu0
  %263 = vdwg.mxu0
  %v264 = vadd.f32 %v124, %v258
  %v265 = vadd.f32 %v126, %v260
  %v266 = vmul.f32 %v264, 0.5
  %v267 = vmul.f32 %v265, 0.5
  %v268 = vsel %vm177, %v264, %v266
  %v269 = vsel %vm178, %v265, %v267
  %v270 = vtanh.pop %v268
  %v271 = vtanh.pop %v269
  %v272 = vmul.f32 %v270, 0.5
  %v273 = vmul.f32 %v271, 0.5
  %v274 = vadd.f32 %v272, 0.5
  %v275 = vadd.f32 %v273, 0.5
  %v276 = vsel %vm177, %v270, %v274
  %v277 = vsel %vm178, %v271, %v275
  %v278 = vmul.f32 %v276, 0.0
  %v279 = vmul.f32 %v276, %v277
  %281 = vrot.lane.b32.xlu0 %v279, 64
  %v282 = vpop.permute.xlu0 %281
  %v284 = vadd.f32 %v278, %v282
  %v285 = vtanh.pop %v284
  %v286 = vmul.f32 %v277, %v285
  %v287 = vpack.c.bf16 %v286, %v286
  %289 = vrot.lane.b32.xlu0 %v287, 64
  %v290 = vpop.permute.xlu0 %289
  %v292 = vsel %vm219, %v290, 0
  %294 = vmatprep.subr.bf16.mxu0 %v204
  %295 = vmatpush1.bf16.msra.mxu0 %v203
  %296 = vmatprep.subr.bf16.mxu0 %v206
  %297 = vmatpush1.bf16.msra.mxu0 %v205
  %298 = vmatprep.subr.bf16.mxu0 %v208
  %299 = vmatpush1.bf16.msra.mxu0 %v207
  %300 = vmatprep.subr.bf16.mxu0 %v210
  %301 = vmatpush1.bf16.msra.mxu0 %v209
  %302 = vmatprep.subr.bf16.mxu0 0
  %303 = vmatpush1.bf16.msra.mxu0 0
  %304 = vmatprep.subr.bf16.mxu0 0
  %305 = vmatpush1.bf16.msra.mxu0 0
  %306 = vmatprep.subr.bf16.mxu0 0
  %307 = vmatpush1.bf16.msra.mxu0 0
  %308 = vmatprep.subr.bf16.mxu0 0
  %309 = vmatpush1.bf16.msra.mxu0 0
  %310 = vmatprep.subr.bf16.mxu0 0
  %311 = vmatpush1.bf16.msra.mxu0 0
  %312 = vmatprep.subr.bf16.mxu0 0
  %313 = vmatpush1.bf16.msra.mxu0 0
  %314 = vmatprep.subr.bf16.mxu0 0
  %315 = vmatpush1.bf16.msra.mxu0 0
  %316 = vmatprep.subr.bf16.mxu0 0
  %317 = vmatpush1.bf16.msra.mxu0 0
  %318 = vmatprep.subr.bf16.mxu0 0
  %319 = vmatpush1.bf16.msra.mxu0 0
  %320 = vmatprep.subr.bf16.mxu0 0
  %321 = vmatpush1.bf16.msra.mxu0 0
  %322 = vmatprep.subr.bf16.mxu0 0
  %323 = vmatpush1.bf16.msra.mxu0 0
  %324 = vmatprep.subr.bf16.mxu0 0
  %325 = vmatpush1.bf16.msra.mxu0 0
  %326 = vmatprep.mubr.bf16.mxu0 0
  %327 = vmatmul.mubr.bf16.gmra.mrb[0].mxu0 %v292
  %v328 = vpop.f32.mrb[0].mxu0
  %v329 = vadd.f32 0.0, %v328
  %v330 = vpop.f32.mrb[0].mxu0
  %v331 = vadd.f32 0.0, %v330
  %v332 = vpop.f32.mrb[0].mxu0
  %v333 = vpop.f32.mrb[0].mxu0
  %334 = vdwg.mxu0
  %v335 = vadd.f32 %v128, %v329
  %v336 = vadd.f32 %v130, %v331
  %v337 = vmul.f32 %v335, 0.5
  %v338 = vmul.f32 %v336, 0.5
  %v339 = vsel %vm177, %v335, %v337
  %v340 = vsel %vm178, %v336, %v338
  %v341 = vtanh.pop %v339
  %v342 = vtanh.pop %v340
  %v343 = vmul.f32 %v341, 0.5
  %v344 = vmul.f32 %v342, 0.5
  %v345 = vadd.f32 %v343, 0.5
  %v346 = vadd.f32 %v344, 0.5
  %v347 = vsel %vm177, %v341, %v345
  %v348 = vsel %vm178, %v342, %v346
  %v349 = vmul.f32 %v347, %v284
  %v350 = vmul.f32 %v347, %v348
  %352 = vrot.lane.b32.xlu0 %v350, 64
  %v353 = vpop.permute.xlu0 %352
  %v355 = vadd.f32 %v349, %v353
  %v356 = vtanh.pop %v355
  %v357 = vmul.f32 %v348, %v356
  %v358 = vpack.c.bf16 %v357, %v357
  %360 = vrot.lane.b32.xlu0 %v358, 64
  %v361 = vpop.permute.xlu0 %360
  %v363 = vsel %vm219, %v361, 0
  %365 = vmatprep.subr.bf16.mxu0 %v204
  %366 = vmatpush1.bf16.msra.mxu0 %v203
  %367 = vmatprep.subr.bf16.mxu0 %v206
  %368 = vmatpush1.bf16.msra.mxu0 %v205
  %369 = vmatprep.subr.bf16.mxu0 %v208
  %370 = vmatpush1.bf16.msra.mxu0 %v207
  %371 = vmatprep.subr.bf16.mxu0 %v210
  %372 = vmatpush1.bf16.msra.mxu0 %v209
  %373 = vmatprep.subr.bf16.mxu0 0
  %374 = vmatpush1.bf16.msra.mxu0 0
  %375 = vmatprep.subr.bf16.mxu0 0
  %376 = vmatpush1.bf16.msra.mxu0 0
  %377 = vmatprep.subr.bf16.mxu0 0
  %378 = vmatpush1.bf16.msra.mxu0 0
  %379 = vmatprep.subr.bf16.mxu0 0
  %380 = vmatpush1.bf16.msra.mxu0 0
  %381 = vmatprep.subr.bf16.mxu0 0
  %382 = vmatpush1.bf16.msra.mxu0 0
  %383 = vmatprep.subr.bf16.mxu0 0
  %384 = vmatpush1.bf16.msra.mxu0 0
  %385 = vmatprep.subr.bf16.mxu0 0
  %386 = vmatpush1.bf16.msra.mxu0 0
  %387 = vmatprep.subr.bf16.mxu0 0
  %388 = vmatpush1.bf16.msra.mxu0 0
  %389 = vmatprep.subr.bf16.mxu0 0
  %390 = vmatpush1.bf16.msra.mxu0 0
  %391 = vmatprep.subr.bf16.mxu0 0
  %392 = vmatpush1.bf16.msra.mxu0 0
  %393 = vmatprep.subr.bf16.mxu0 0
  %394 = vmatpush1.bf16.msra.mxu0 0
  %395 = vmatprep.subr.bf16.mxu0 0
  %396 = vmatpush1.bf16.msra.mxu0 0
  %397 = vmatprep.mubr.bf16.mxu0 0
  %398 = vmatmul.mubr.bf16.gmra.mrb[0].mxu0 %v363
  %v399 = vpop.f32.mrb[0].mxu0
  %v400 = vadd.f32 0.0, %v399
  %v401 = vpop.f32.mrb[0].mxu0
  %v402 = vadd.f32 0.0, %v401
  %v403 = vpop.f32.mrb[0].mxu0
  %v404 = vpop.f32.mrb[0].mxu0
  %405 = vdwg.mxu0
  %v406 = vadd.f32 %v134, %v400
  %v407 = vadd.f32 %v136, %v402
  %v408 = vmul.f32 %v406, 0.5
  %v409 = vmul.f32 %v407, 0.5
  %v410 = vsel %vm177, %v406, %v408
  %v411 = vsel %vm178, %v407, %v409
  %v412 = vtanh.pop %v410
  %v413 = vtanh.pop %v411
  %v414 = vmul.f32 %v412, 0.5
  %v415 = vmul.f32 %v413, 0.5
  %v416 = vadd.f32 %v414, 0.5
  %v417 = vadd.f32 %v415, 0.5
  %v418 = vsel %vm177, %v412, %v416
  %v419 = vsel %vm178, %v413, %v417
  %v420 = vmul.f32 %v418, %v355
  %v421 = vmul.f32 %v418, %v419
  %423 = vrot.lane.b32.xlu0 %v421, 64
  %v424 = vpop.permute.xlu0 %423
  %v426 = vadd.f32 %v420, %v424
  %v427 = vtanh.pop %v426
  %v428 = vmul.f32 %v419, %v427
  %v429 = vpack.c.bf16 %v428, %v428
  %431 = vrot.lane.b32.xlu0 %v429, 64
  %v432 = vpop.permute.xlu0 %431
  %v434 = vsel %vm219, %v432, 0
  %436 = vmatprep.subr.bf16.mxu0 %v204
  %437 = vmatpush1.bf16.msra.mxu0 %v203
  %438 = vmatprep.subr.bf16.mxu0 %v206
  %439 = vmatpush1.bf16.msra.mxu0 %v205
  %440 = vmatprep.subr.bf16.mxu0 %v208
  %441 = vmatpush1.bf16.msra.mxu0 %v207
  %442 = vmatprep.subr.bf16.mxu0 %v210
  %443 = vmatpush1.bf16.msra.mxu0 %v209
  %444 = vmatprep.subr.bf16.mxu0 0
  %445 = vmatpush1.bf16.msra.mxu0 0
  %446 = vmatprep.subr.bf16.mxu0 0
  %447 = vmatpush1.bf16.msra.mxu0 0
  %448 = vmatprep.subr.bf16.mxu0 0
  %449 = vmatpush1.bf16.msra.mxu0 0
  %450 = vmatprep.subr.bf16.mxu0 0
  %451 = vmatpush1.bf16.msra.mxu0 0
  %452 = vmatprep.subr.bf16.mxu0 0
  %453 = vmatpush1.bf16.msra.mxu0 0
  %454 = vmatprep.subr.bf16.mxu0 0
  %455 = vmatpush1.bf16.msra.mxu0 0
  %456 = vmatprep.subr.bf16.mxu0 0
  %457 = vmatpush1.bf16.msra.mxu0 0
  %458 = vmatprep.subr.bf16.mxu0 0
  %459 = vmatpush1.bf16.msra.mxu0 0
  %460 = vmatprep.subr.bf16.mxu0 0
  %461 = vmatpush1.bf16.msra.mxu0 0
  %462 = vmatprep.subr.bf16.mxu0 0
  %463 = vmatpush1.bf16.msra.mxu0 0
  %464 = vmatprep.subr.bf16.mxu0 0
  %465 = vmatpush1.bf16.msra.mxu0 0
  %466 = vmatprep.subr.bf16.mxu0 0
  %467 = vmatpush1.bf16.msra.mxu0 0
  %468 = vmatprep.mubr.bf16.mxu0 0
  %469 = vmatmul.mubr.bf16.gmra.mrb[0].mxu0 %v434
  %v470 = vpop.f32.mrb[0].mxu0
  %v471 = vadd.f32 0.0, %v470
  %v472 = vpop.f32.mrb[0].mxu0
  %v473 = vadd.f32 0.0, %v472
  %v474 = vpop.f32.mrb[0].mxu0
  %v475 = vpop.f32.mrb[0].mxu0
  %476 = vdwg.mxu0
  %v477 = vadd.f32 %v138, %v471
  %v478 = vadd.f32 %v140, %v473
  %v479 = vmul.f32 %v477, 0.5
  %v480 = vmul.f32 %v478, 0.5
  %v481 = vsel %vm177, %v477, %v479
  %v482 = vsel %vm178, %v478, %v480
  %v483 = vtanh.pop %v481
  %v484 = vtanh.pop %v482
  %v485 = vmul.f32 %v483, 0.5
  %v486 = vmul.f32 %v484, 0.5
  %v487 = vadd.f32 %v485, 0.5
  %v488 = vadd.f32 %v486, 0.5
  %v489 = vsel %vm177, %v483, %v487
  %v490 = vsel %vm178, %v484, %v488
  %v491 = vmul.f32 %v489, %v426
  %v492 = vmul.f32 %v489, %v490
  %494 = vrot.lane.b32.xlu0 %v492, 64
  %v495 = vpop.permute.xlu0 %494
  %v497 = vadd.f32 %v491, %v495
  %v498 = vtanh.pop %v497
  %v499 = vmul.f32 %v490, %v498
  %v500 = vpack.c.bf16 %v499, %v499
  %502 = vrot.lane.b32.xlu0 %v500, 64
  %v503 = vpop.permute.xlu0 %502
  %v505 = vsel %vm219, %v503, 0
  %507 = vmatprep.subr.bf16.mxu0 %v204
  %508 = vmatpush1.bf16.msra.mxu0 %v203
  %509 = vmatprep.subr.bf16.mxu0 %v206
  %510 = vmatpush1.bf16.msra.mxu0 %v205
  %511 = vmatprep.subr.bf16.mxu0 %v208
  %512 = vmatpush1.bf16.msra.mxu0 %v207
  %513 = vmatprep.subr.bf16.mxu0 %v210
  %514 = vmatpush1.bf16.msra.mxu0 %v209
  %515 = vmatprep.subr.bf16.mxu0 0
  %516 = vmatpush1.bf16.msra.mxu0 0
  %517 = vmatprep.subr.bf16.mxu0 0
  %518 = vmatpush1.bf16.msra.mxu0 0
  %519 = vmatprep.subr.bf16.mxu0 0
  %520 = vmatpush1.bf16.msra.mxu0 0
  %521 = vmatprep.subr.bf16.mxu0 0
  %522 = vmatpush1.bf16.msra.mxu0 0
  %523 = vmatprep.subr.bf16.mxu0 0
  %524 = vmatpush1.bf16.msra.mxu0 0
  %525 = vmatprep.subr.bf16.mxu0 0
  %526 = vmatpush1.bf16.msra.mxu0 0
  %527 = vmatprep.subr.bf16.mxu0 0
  %528 = vmatpush1.bf16.msra.mxu0 0
  %529 = vmatprep.subr.bf16.mxu0 0
  %530 = vmatpush1.bf16.msra.mxu0 0
  %531 = vmatprep.subr.bf16.mxu0 0
  %532 = vmatpush1.bf16.msra.mxu0 0
  %533 = vmatprep.subr.bf16.mxu0 0
  %534 = vmatpush1.bf16.msra.mxu0 0
  %535 = vmatprep.subr.bf16.mxu0 0
  %536 = vmatpush1.bf16.msra.mxu0 0
  %537 = vmatprep.subr.bf16.mxu0 0
  %538 = vmatpush1.bf16.msra.mxu0 0
  %539 = vmatprep.mubr.bf16.mxu0 0
  %540 = vmatmul.mubr.bf16.gmra.mrb[0].mxu0 %v505
  %v541 = vpop.f32.mrb[0].mxu0
  %v542 = vadd.f32 0.0, %v541
  %v543 = vpop.f32.mrb[0].mxu0
  %v544 = vadd.f32 0.0, %v543
  %v545 = vpop.f32.mrb[0].mxu0
  %v546 = vpop.f32.mrb[0].mxu0
  %547 = vdwg.mxu0
  %v548 = vadd.f32 %v144, %v542
  %v549 = vadd.f32 %v146, %v544
  %v550 = vmul.f32 %v548, 0.5
  %v551 = vmul.f32 %v549, 0.5
  %v552 = vsel %vm177, %v548, %v550
  %v553 = vsel %vm178, %v549, %v551
  %v554 = vtanh.pop %v552
  %v555 = vtanh.pop %v553
  %v556 = vmul.f32 %v554, 0.5
  %v557 = vmul.f32 %v555, 0.5
  %v558 = vadd.f32 %v556, 0.5
  %v559 = vadd.f32 %v557, 0.5
  %v560 = vsel %vm177, %v554, %v558
  %v561 = vsel %vm178, %v555, %v559
  %v562 = vmul.f32 %v560, %v497
  %v563 = vmul.f32 %v560, %v561
  %565 = vrot.lane.b32.xlu0 %v563, 64
  %v566 = vpop.permute.xlu0 %565
  %v568 = vadd.f32 %v562, %v566
  %v569 = vtanh.pop %v568
  %v570 = vmul.f32 %v561, %v569
  %v571 = vpack.c.bf16 %v570, %v570
  %573 = vrot.lane.b32.xlu0 %v571, 64
  %v574 = vpop.permute.xlu0 %573
  %v576 = vsel %vm219, %v574, 0
  %578 = vmatprep.subr.bf16.mxu0 %v204
  %579 = vmatpush1.bf16.msra.mxu0 %v203
  %580 = vmatprep.subr.bf16.mxu0 %v206
  %581 = vmatpush1.bf16.msra.mxu0 %v205
  %582 = vmatprep.subr.bf16.mxu0 %v208
  %583 = vmatpush1.bf16.msra.mxu0 %v207
  %584 = vmatprep.subr.bf16.mxu0 %v210
  %585 = vmatpush1.bf16.msra.mxu0 %v209
  %586 = vmatprep.subr.bf16.mxu0 0
  %587 = vmatpush1.bf16.msra.mxu0 0
  %588 = vmatprep.subr.bf16.mxu0 0
  %589 = vmatpush1.bf16.msra.mxu0 0
  %590 = vmatprep.subr.bf16.mxu0 0
  %591 = vmatpush1.bf16.msra.mxu0 0
  %592 = vmatprep.subr.bf16.mxu0 0
  %593 = vmatpush1.bf16.msra.mxu0 0
  %594 = vmatprep.subr.bf16.mxu0 0
  %595 = vmatpush1.bf16.msra.mxu0 0
  %596 = vmatprep.subr.bf16.mxu0 0
  %597 = vmatpush1.bf16.msra.mxu0 0
  %598 = vmatprep.subr.bf16.mxu0 0
  %599 = vmatpush1.bf16.msra.mxu0 0
  %600 = vmatprep.subr.bf16.mxu0 0
  %601 = vmatpush1.bf16.msra.mxu0 0
  %602 = vmatprep.subr.bf16.mxu0 0
  %603 = vmatpush1.bf16.msra.mxu0 0
  %604 = vmatprep.subr.bf16.mxu0 0
  %605 = vmatpush1.bf16.msra.mxu0 0
  %606 = vmatprep.subr.bf16.mxu0 0
  %607 = vmatpush1.bf16.msra.mxu0 0
  %608 = vmatprep.subr.bf16.mxu0 0
  %609 = vmatpush1.bf16.msra.mxu0 0
  %610 = vmatprep.mubr.bf16.mxu0 0
  %611 = vmatmul.mubr.bf16.gmra.mrb[0].mxu0 %v576
  %v612 = vpop.f32.mrb[0].mxu0
  %v613 = vadd.f32 0.0, %v612
  %v614 = vpop.f32.mrb[0].mxu0
  %v615 = vadd.f32 0.0, %v614
  %v616 = vpop.f32.mrb[0].mxu0
  %v617 = vpop.f32.mrb[0].mxu0
  %618 = vdwg.mxu0
  %v619 = vadd.f32 %v148, %v613
  %v620 = vadd.f32 %v150, %v615
  %v621 = vmul.f32 %v619, 0.5
  %v622 = vmul.f32 %v620, 0.5
  %v623 = vsel %vm177, %v619, %v621
  %v624 = vsel %vm178, %v620, %v622
  %v625 = vtanh.pop %v623
  %v626 = vtanh.pop %v624
  %v627 = vmul.f32 %v625, 0.5
  %v628 = vmul.f32 %v626, 0.5
  %v629 = vadd.f32 %v627, 0.5
  %v630 = vadd.f32 %v628, 0.5
  %v631 = vsel %vm177, %v625, %v629
  %v632 = vsel %vm178, %v626, %v630
  %v633 = vmul.f32 %v631, %v568
  %v634 = vmul.f32 %v631, %v632
  %636 = vrot.lane.b32.xlu0 %v634, 64
  %v637 = vpop.permute.xlu0 %636
  %v639 = vadd.f32 %v633, %v637
  %v640 = vtanh.pop %v639
  %v641 = vmul.f32 %v632, %v640
  %v642 = vpack.c.bf16 %v641, %v641
  %644 = vrot.lane.b32.xlu0 %v642, 64
  %v645 = vpop.permute.xlu0 %644
  %v647 = vsel %vm219, %v645, 0
  %649 = vmatprep.subr.bf16.mxu0 %v204
  %650 = vmatpush1.bf16.msra.mxu0 %v203
  %651 = vmatprep.subr.bf16.mxu0 %v206
  %652 = vmatpush1.bf16.msra.mxu0 %v205
  %653 = vmatprep.subr.bf16.mxu0 %v208
  %654 = vmatpush1.bf16.msra.mxu0 %v207
  %655 = vmatprep.subr.bf16.mxu0 %v210
  %656 = vmatpush1.bf16.msra.mxu0 %v209
  %657 = vmatprep.subr.bf16.mxu0 0
  %658 = vmatpush1.bf16.msra.mxu0 0
  %659 = vmatprep.subr.bf16.mxu0 0
  %660 = vmatpush1.bf16.msra.mxu0 0
  %661 = vmatprep.subr.bf16.mxu0 0
  %662 = vmatpush1.bf16.msra.mxu0 0
  %663 = vmatprep.subr.bf16.mxu0 0
  %664 = vmatpush1.bf16.msra.mxu0 0
  %665 = vmatprep.subr.bf16.mxu0 0
  %666 = vmatpush1.bf16.msra.mxu0 0
  %667 = vmatprep.subr.bf16.mxu0 0
  %668 = vmatpush1.bf16.msra.mxu0 0
  %669 = vmatprep.subr.bf16.mxu0 0
  %670 = vmatpush1.bf16.msra.mxu0 0
  %671 = vmatprep.subr.bf16.mxu0 0
  %672 = vmatpush1.bf16.msra.mxu0 0
  %673 = vmatprep.subr.bf16.mxu0 0
  %674 = vmatpush1.bf16.msra.mxu0 0
  %675 = vmatprep.subr.bf16.mxu0 0
  %676 = vmatpush1.bf16.msra.mxu0 0
  %677 = vmatprep.subr.bf16.mxu0 0
  %678 = vmatpush1.bf16.msra.mxu0 0
  %679 = vmatprep.subr.bf16.mxu0 0
  %680 = vmatpush1.bf16.msra.mxu0 0
  %681 = vmatprep.mubr.bf16.mxu0 0
  %682 = vmatmul.mubr.bf16.gmra.mrb[0].mxu0 %v647
  %v683 = vpop.f32.mrb[0].mxu0
  %v684 = vadd.f32 0.0, %v683
  %v685 = vpop.f32.mrb[0].mxu0
  %v686 = vadd.f32 0.0, %v685
  %v687 = vpop.f32.mrb[0].mxu0
  %v688 = vpop.f32.mrb[0].mxu0
  %689 = vdwg.mxu0
  %v690 = vadd.f32 %v154, %v684
  %v691 = vadd.f32 %v156, %v686
  %v692 = vmul.f32 %v690, 0.5
  %v693 = vmul.f32 %v691, 0.5
  %v694 = vsel %vm177, %v690, %v692
  %v695 = vsel %vm178, %v691, %v693
  %v696 = vtanh.pop %v694
  %v697 = vtanh.pop %v695
  %v698 = vmul.f32 %v696, 0.5
  %v699 = vmul.f32 %v697, 0.5
  %v700 = vadd.f32 %v698, 0.5
  %v701 = vadd.f32 %v699, 0.5
  %v702 = vsel %vm177, %v696, %v700
  %v703 = vsel %vm178, %v697, %v701
  %v704 = vmul.f32 %v702, %v639
  %v705 = vmul.f32 %v702, %v703
  %707 = vrot.lane.b32.xlu0 %v705, 64
  %v708 = vpop.permute.xlu0 %707
  %v710 = vadd.f32 %v704, %v708
  %v711 = vtanh.pop %v710
  %v712 = vmul.f32 %v703, %v711
  %v713 = vpack.c.bf16 %v712, %v712
  %715 = vrot.lane.b32.xlu0 %v713, 64
  %v716 = vpop.permute.xlu0 %715
  %v718 = vsel %vm219, %v716, 0
  %720 = vmatprep.subr.bf16.mxu0 %v204
  %721 = vmatpush1.bf16.msra.mxu0 %v203
  %722 = vmatprep.subr.bf16.mxu0 %v206
  %723 = vmatpush1.bf16.msra.mxu0 %v205
  %724 = vmatprep.subr.bf16.mxu0 %v208
  %725 = vmatpush1.bf16.msra.mxu0 %v207
  %726 = vmatprep.subr.bf16.mxu0 %v210
  %727 = vmatpush1.bf16.msra.mxu0 %v209
  %728 = vmatprep.subr.bf16.mxu0 0
  %729 = vmatpush1.bf16.msra.mxu0 0
  %730 = vmatprep.subr.bf16.mxu0 0
  %731 = vmatpush1.bf16.msra.mxu0 0
  %732 = vmatprep.subr.bf16.mxu0 0
  %733 = vmatpush1.bf16.msra.mxu0 0
  %734 = vmatprep.subr.bf16.mxu0 0
  %735 = vmatpush1.bf16.msra.mxu0 0
  %736 = vmatprep.subr.bf16.mxu0 0
  %737 = vmatpush1.bf16.msra.mxu0 0
  %738 = vmatprep.subr.bf16.mxu0 0
  %739 = vmatpush1.bf16.msra.mxu0 0
  %740 = vmatprep.subr.bf16.mxu0 0
  %741 = vmatpush1.bf16.msra.mxu0 0
  %742 = vmatprep.subr.bf16.mxu0 0
  %743 = vmatpush1.bf16.msra.mxu0 0
  %744 = vmatprep.subr.bf16.mxu0 0
  %745 = vmatpush1.bf16.msra.mxu0 0
  %746 = vmatprep.subr.bf16.mxu0 0
  %747 = vmatpush1.bf16.msra.mxu0 0
  %748 = vmatprep.subr.bf16.mxu0 0
  %749 = vmatpush1.bf16.msra.mxu0 0
  %750 = vmatprep.subr.bf16.mxu0 0
  %751 = vmatpush1.bf16.msra.mxu0 0
  %752 = vmatprep.mubr.bf16.mxu0 0
  %753 = vmatmul.mubr.bf16.gmra.mrb[0].mxu0 %v718
  %v754 = vpop.f32.mrb[0].mxu0
  %v755 = vadd.f32 0.0, %v754
  %v756 = vpop.f32.mrb[0].mxu0
  %v757 = vadd.f32 0.0, %v756
  %v758 = vpop.f32.mrb[0].mxu0
  %v759 = vpop.f32.mrb[0].mxu0
  %760 = vdwg.mxu0
  %v761 = vadd.f32 %v158, %v755
  %v762 = vadd.f32 %v160, %v757
  %v763 = vmul.f32 %v761, 0.5
  %v764 = vmul.f32 %v762, 0.5
  %v765 = vsel %vm177, %v761, %v763
  %v766 = vsel %vm178, %v762, %v764
  %v767 = vtanh.pop %v765
  %v768 = vtanh.pop %v766
  %v769 = vmul.f32 %v767, 0.5
  %v770 = vmul.f32 %v768, 0.5
  %v771 = vadd.f32 %v769, 0.5
  %v772 = vadd.f32 %v770, 0.5
  %v773 = vsel %vm177, %v767, %v771
  %v774 = vsel %vm178, %v768, %v772
  %v775 = vmul.f32 %v773, %v710
  %v776 = vmul.f32 %v773, %v774
  %778 = vrot.lane.b32.xlu0 %v776, 64
  %v779 = vpop.permute.xlu0 %778
  %v781 = vadd.f32 %v775, %v779
  %v782 = vtanh.pop %v781
  %v783 = vmul.f32 %v774, %v782
  %v784 = vmul.f32 %v286, %v783
  %v785 = vmul.f32 %v357, %v783
  %v786 = vmul.f32 %v428, %v783
  %v787 = vmul.f32 %v499, %v783
  %v788 = vmul.f32 %v570, %v783
  %v789 = vmul.f32 %v641, %v783
  %v790 = vmul.f32 %v712, %v783
  %v791 = vmul.f32 %v783, %v783
  %800 = vrot.lane.b32.xlu0 %v784, 64
  %v801 = vpop.permute.xlu0 %800
  %802 = vrot.lane.b32.xlu0 %v785, 64
  %v803 = vpop.permute.xlu0 %802
  %804 = vrot.lane.b32.xlu0 %v786, 64
  %v805 = vpop.permute.xlu0 %804
  %806 = vrot.lane.b32.xlu0 %v787, 64
  %v807 = vpop.permute.xlu0 %806
  %808 = vrot.lane.b32.xlu0 %v788, 64
  %v809 = vpop.permute.xlu0 %808
  %810 = vrot.lane.b32.xlu0 %v789, 64
  %v811 = vpop.permute.xlu0 %810
  %812 = vrot.lane.b32.xlu0 %v790, 64
  %v813 = vpop.permute.xlu0 %812
  %814 = vrot.lane.b32.xlu0 %v791, 64
  %v815 = vpop.permute.xlu0 %814
  %v824 = vsel %vm219, %v801, 0.0
  %825 = vadd.xlane.f32.xlu0 %v824
  %v826 = vpop.xlane.xlu0 %825
  %v827 = vsel %vm219, %v803, 0.0
  %828 = vadd.xlane.f32.xlu0 %v827
  %v829 = vpop.xlane.xlu0 %828
  %v830 = vsel %vm219, %v805, 0.0
  %831 = vadd.xlane.f32.xlu0 %v830
  %v832 = vpop.xlane.xlu0 %831
  %v833 = vsel %vm219, %v807, 0.0
  %834 = vadd.xlane.f32.xlu0 %v833
  %v835 = vpop.xlane.xlu0 %834
  %v836 = vsel %vm219, %v809, 0.0
  %837 = vadd.xlane.f32.xlu0 %v836
  %v838 = vpop.xlane.xlu0 %837
  %v839 = vsel %vm219, %v811, 0.0
  %840 = vadd.xlane.f32.xlu0 %v839
  %v841 = vpop.xlane.xlu0 %840
  %v842 = vsel %vm219, %v813, 0.0
  %843 = vadd.xlane.f32.xlu0 %v842
  %v844 = vpop.xlane.xlu0 %843
  %v845 = vsel %vm219, %v815, 0.0
  %846 = vadd.xlane.f32.xlu0 %v845
  %v847 = vpop.xlane.xlu0 %846
  %v848 = vmul.f32 %v826, 0.125
  %v849 = vmul.f32 %v829, 0.125
  %v850 = vmul.f32 %v832, 0.125
  %v851 = vmul.f32 %v835, 0.125
  %v852 = vmul.f32 %v838, 0.125
  %v853 = vmul.f32 %v841, 0.125
  %v854 = vmul.f32 %v844, 0.125
  %v855 = vmul.f32 %v847, 0.125
  %vm856 = vcmask 7168
  %v857 = vsel %vm856, %v848, %v849
  %vm858 = vcmask 15360
  %v859 = vsel %vm858, %v857, %v850
  %vm860 = vcmask 23552
  %v861 = vsel %vm860, %v859, %v851
  %vm862 = vcmask 31744
  %v863 = vsel %vm862, %v861, %v852
  %vm864 = vcmask 39936
  %v865 = vsel %vm864, %v863, %v853
  %vm866 = vcmask 48128
  %v867 = vsel %vm866, %v865, %v854
  %vm868 = vcmask 56320
  %v869 = vsel %vm868, %v867, %v855
  %vm870 = vcmask 64512
  %v871 = vsel %vm870, %v869, -inf
  %872 = vmax.xlane.f32.xlu0 %v871
  %v873 = vpop.xlane.xlu0 %872
  %v874 = vsub.f32 %v869, %v873
  %v875 = vmul.f32 %v874, 1.442695
  %v876 = vpow.pop %v875
  %v877 = vsel %vm870, %v876, 0.0
  %878 = vadd.xlane.f32.xlu0 %v877
  %v879 = vpop.xlane.xlu0 %878
  %v880 = vrcp.pop %v879
  %882 = vset.pattern.permute.xlu0 0
  %883 = vperm.xlu0 %882, %v876
  %v884 = vpop.permute.xlu0 %883
  %v886 = vmul.f32 %v884, %v286
  %887 = vset.pattern.permute.xlu0 1
  %888 = vperm.xlu0 %887, %v876
  %v889 = vpop.permute.xlu0 %888
  %v891 = vmul.f32 %v889, %v357
  %892 = vset.pattern.permute.xlu0 2
  %893 = vperm.xlu0 %892, %v876
  %v894 = vpop.permute.xlu0 %893
  %v896 = vmul.f32 %v894, %v428
  %897 = vset.pattern.permute.xlu0 3
  %898 = vperm.xlu0 %897, %v876
  %v899 = vpop.permute.xlu0 %898
  %v901 = vmul.f32 %v899, %v499
  %902 = vset.pattern.permute.xlu0 4
  %903 = vperm.xlu0 %902, %v876
  %v904 = vpop.permute.xlu0 %903
  %v906 = vmul.f32 %v904, %v570
  %907 = vset.pattern.permute.xlu0 5
  %908 = vperm.xlu0 %907, %v876
  %v909 = vpop.permute.xlu0 %908
  %v911 = vmul.f32 %v909, %v641
  %912 = vset.pattern.permute.xlu0 6
  %913 = vperm.xlu0 %912, %v876
  %v914 = vpop.permute.xlu0 %913
  %v916 = vmul.f32 %v914, %v712
  %917 = vset.pattern.permute.xlu0 7
  %918 = vperm.xlu0 %917, %v876
  %v919 = vpop.permute.xlu0 %918
  %v921 = vmul.f32 %v919, %v783
  %v922 = vadd.f32 %v886, %v891
  %v923 = vadd.f32 %v896, %v901
  %v924 = vadd.f32 %v906, %v911
  %v925 = vadd.f32 %v916, %v921
  %v926 = vadd.f32 %v922, %v923
  %v927 = vadd.f32 %v924, %v925
  %v928 = vadd.f32 %v926, %v927
  %v929 = vmul.f32 %v928, %v880
  %v930 = vpack.c.bf16 %v929, %v929
  %v931 = vld [vmem:[%s4] sm:$0xf]
  %v932 = vld [vmem:[%s4 + $0x4] sm:$0xf]
  %v933 = vld [vmem:[%s4 + $0x8] sm:$0xf]
  %v934 = vld [vmem:[%s4 + $0xc] sm:$0xf]
  %v935 = vld [vmem:[%s4 + $0x10] sm:$0xf]
  %v936 = vld [vmem:[%s4 + $0x14] sm:$0xf]
  %v937 = vld [vmem:[%s4 + $0x18] sm:$0xf]
  %v938 = vld [vmem:[%s4 + $0x1c] sm:$0xf]
  %v939 = vld [vmem:[%s5] sm:$0x1]
  %v941 = vlaneseq
  %v942 = vshrl.u32 %v941, 7
  %v943 = vsub.s32 0, %v942
  %v944 = vrot.slane %v939, %v943
  %947 = vrot.lane.b32.xlu0 %v930, 64
  %v948 = vpop.permute.xlu0 %947
  %v957 = vunpack.c.l.b16 %v931
  %v958 = vunpack.c.l.b16 %v932
  %v959 = vunpack.c.l.b16 %v933
  %v960 = vunpack.c.l.b16 %v934
  %v961 = vunpack.c.l.b16 %v935
  %v962 = vunpack.c.l.b16 %v936
  %v963 = vunpack.c.l.b16 %v937
  %v964 = vunpack.c.l.b16 %v938
  %v965 = vpack.c.b16 %v958, %v957
  %v966 = vpack.c.b16 %v960, %v959
  %v967 = vpack.c.b16 %v962, %v961
  %v968 = vpack.c.b16 %v964, %v963
  %v974 = vsel %vm219, %v948, 0
  %976 = vmatprep.subr.bf16.mxu0 0
  %977 = vmatpush1.bf16.msra.mxu0 %v965
  %978 = vmatprep.subr.bf16.mxu0 0
  %979 = vmatpush1.bf16.msra.mxu0 %v966
  %980 = vmatprep.subr.bf16.mxu0 0
  %981 = vmatpush1.bf16.msra.mxu0 %v967
  %982 = vmatprep.subr.bf16.mxu0 0
  %983 = vmatpush1.bf16.msra.mxu0 %v968
  %984 = vmatprep.subr.bf16.mxu0 0
  %985 = vmatpush1.bf16.msra.mxu0 0
  %986 = vmatprep.subr.bf16.mxu0 0
  %987 = vmatpush1.bf16.msra.mxu0 0
  %988 = vmatprep.subr.bf16.mxu0 0
  %989 = vmatpush1.bf16.msra.mxu0 0
  %990 = vmatprep.subr.bf16.mxu0 0
  %991 = vmatpush1.bf16.msra.mxu0 0
  %992 = vmatprep.subr.bf16.mxu0 0
  %993 = vmatpush1.bf16.msra.mxu0 0
  %994 = vmatprep.subr.bf16.mxu0 0
  %995 = vmatpush1.bf16.msra.mxu0 0
  %996 = vmatprep.subr.bf16.mxu0 0
  %997 = vmatpush1.bf16.msra.mxu0 0
  %998 = vmatprep.subr.bf16.mxu0 0
  %999 = vmatpush1.bf16.msra.mxu0 0
  %1000 = vmatprep.subr.bf16.mxu0 0
  %1001 = vmatpush1.bf16.msra.mxu0 0
  %1002 = vmatprep.subr.bf16.mxu0 0
  %1003 = vmatpush1.bf16.msra.mxu0 0
  %1004 = vmatprep.subr.bf16.mxu0 0
  %1005 = vmatpush1.bf16.msra.mxu0 0
  %1006 = vmatprep.subr.bf16.mxu0 0
  %1007 = vmatpush1.bf16.msra.mxu0 0
  %1008 = vmatprep.mubr.bf16.mxu0 0
  %1009 = vmatmul.mubr.bf16.gmra.mrb[0].mxu0 %v974
  %v1010 = vpop.f32.mrb[0].mxu0
  %v1011 = vadd.f32 %v944, %v1010
  %v1012 = vpop.f32.mrb[0].mxu0
  %v1013 = vpop.f32.mrb[0].mxu0
  %v1014 = vpop.f32.mrb[0].mxu0
  %1015 = vdwg.mxu0
  %1016 = vst [vmem:[%s6] sm:$0xff] %v1011
  // Predicated region
  $region26: #{rnn_reward_forward.1} parent=0 // pred_check
    _
  $region27: #{rnn_reward_forward.1} parent=0 // pred_check_branch
    %1018 = sbr.rel (0) target = $region29
  $region28: #{rnn_reward_forward.1} parent=0 // pred_region
    _
  $region29: #{rnn_reward_forward.1} parent=0 // pred_fallthru
    _
  // Predicated region
  $region30: #{rnn_reward_forward.1} parent=0 // pred_check
    _
  $region31: #{rnn_reward_forward.1} parent=0 // pred_check_branch
    %1020 = sbr.rel (0) target = $region33
  $region32: #{rnn_reward_forward.1} parent=0 // pred_region
    _
  $region33: #{rnn_reward_forward.1} parent=0 // pred_fallthru
    _

</llo_original>
